<compile_context>
chip_gen: v5e
topology: v5e:2x2
jax: 0.10.0
libtpu: 0.0.40
codegen_flags: <defaults>
</compile_context>

<pallas_src>
import functools

import jax
import jax.numpy as jnp
from jax.experimental import pallas as pl
from jax.experimental.pallas import tpu as pltpu


LN_EPS = 1e-5        # PyTorch nn.LayerNorm default eps
OUT_PAD = 128        # lane-dense output slab: col 0 = q1, col 1 = q2
TB_MAX = 1024        # max batch-tile rows (VMEM footprint stays ~few MiB)


def _critic_kernel(x_ref, a_ref,
                   w1x_ref, w1a_ref, b1_ref, g_ref, beta_ref,
                   w2_ref, b2_ref, w3_ref, b3_ref,
                   o_ref, *, h_real):
    x = x_ref[...]                                   # [TB, Dx]
    a = a_ref[...]                                   # [TB, Da]
    h_pad = b1_ref.shape[-1]

    # Per-head lane masks: Q1 occupies lanes [0, H), Q2 occupies [H, 2H).
    lane = jax.lax.broadcasted_iota(jnp.int32, (1, h_pad), 1)
    m1 = (lane < h_real).astype(jnp.float32)
    m2 = jnp.logical_and(lane >= h_real, lane < 2 * h_real).astype(jnp.float32)
    inv_h = 1.0 / float(h_real)

    # ---- Linear 1 (both heads in one packed matmul pair; no concat) ----
    h = (jnp.dot(x, w1x_ref[...], preferred_element_type=jnp.float32)
         + jnp.dot(a, w1a_ref[...], preferred_element_type=jnp.float32)
         + b1_ref[...])                              # [TB, H_pad]

    # ---- Segmented LayerNorm (exact per-head stats over real lanes) ----
    mean1 = jnp.sum(h * m1, axis=-1, keepdims=True) * inv_h
    mean2 = jnp.sum(h * m2, axis=-1, keepdims=True) * inv_h
    centered = (h - mean1) * m1 + (h - mean2) * m2   # padded lanes -> exactly 0
    c2 = centered * centered
    var1 = jnp.sum(c2 * m1, axis=-1, keepdims=True) * inv_h
    var2 = jnp.sum(c2 * m2, axis=-1, keepdims=True) * inv_h
    inv_std = (jax.lax.rsqrt(var1 + LN_EPS) * m1
               + jax.lax.rsqrt(var2 + LN_EPS) * m2)
    h = centered * inv_std * g_ref[...] + beta_ref[...]

    # ---- Tanh ----
    h = jnp.tanh(h)

    # ---- Linear 2 (block-diagonal packed weight, one matmul for both heads) ----
    h = jnp.dot(h, w2_ref[...], preferred_element_type=jnp.float32) + b2_ref[...]

    # ---- ELU (alpha = 1.0); padded lanes are 0 -> stay 0 ----
    h = jnp.where(h > 0, h, jnp.exp(h) - 1.0)

    # ---- Linear 3 -> lane-dense slab: q1 in col 0, q2 in col 1 ----
    o = jnp.dot(h, w3_ref[...], preferred_element_type=jnp.float32) + b3_ref[...]
    o_ref[...] = o.astype(o_ref.dtype)


def init_params(key, latent_dims, hidden_dims, action_dims):
    """Deterministic synthetic init in (in, out) layout (= PyTorch x @ W.T + b)."""
    # TODO(synk): the original applies utils.weight_init (orthogonal); init
    # scheme does not affect forward-pass semantics, so a simple normal is used.
    D = latent_dims + action_dims

    def one_q(k):
        ks = jax.random.split(k, 6)
        s = 0.1
        return {
            "w1": s * jax.random.normal(ks[0], (D, hidden_dims), jnp.float32),
            "b1": s * jax.random.normal(ks[1], (hidden_dims,), jnp.float32),
            "gamma": jnp.ones((hidden_dims,), jnp.float32),
            "beta": jnp.zeros((hidden_dims,), jnp.float32),
            "w2": s * jax.random.normal(ks[2], (hidden_dims, hidden_dims), jnp.float32),
            "b2": s * jax.random.normal(ks[3], (hidden_dims,), jnp.float32),
            "w3": s * jax.random.normal(ks[4], (hidden_dims, 1), jnp.float32),
            "b3": s * jax.random.normal(ks[5], (1,), jnp.float32),
        }

    k1, k2 = jax.random.split(key)
    return {"q1": one_q(k1), "q2": one_q(k2)}


def prepare_params(params, latent_dims):
    """One-time param prep: pack BOTH Q heads into a single 128-lane hidden.

    Layout: Q1 in lanes [0, H), Q2 in lanes [H, 2H), zeros elsewhere.
      - w1x / w1a: both heads' first-layer weights side by side.
      - w2: block-diagonal (no cross-head mixing).
      - w3 / b3: Q1 -> output column 0, Q2 -> output column 1.
    """
    q1, q2 = params["q1"], params["q2"]
    H = q1["w1"].shape[1]
    H2 = 2 * H
    H_pad = max(128, ((H2 + 127) // 128) * 128)
    Dx = latent_dims
    D = q1["w1"].shape[0]
    Da = D - Dx

    def pack_vec(v1, v2):
        out = jnp.zeros((1, H_pad), jnp.float32)
        return out.at[0, :H].set(v1).at[0, H:H2].set(v2)

    w1x = (jnp.zeros((Dx, H_pad), jnp.float32)
           .at[:, :H].set(q1["w1"][:Dx]).at[:, H:H2].set(q2["w1"][:Dx]))
    w1a = (jnp.zeros((Da, H_pad), jnp.float32)
           .at[:, :H].set(q1["w1"][Dx:]).at[:, H:H2].set(q2["w1"][Dx:]))
    b1 = pack_vec(q1["b1"], q2["b1"])
    gamma = pack_vec(q1["gamma"], q2["gamma"])
    beta = pack_vec(q1["beta"], q2["beta"])

    w2 = (jnp.zeros((H_pad, H_pad), jnp.float32)
          .at[:H, :H].set(q1["w2"]).at[H:H2, H:H2].set(q2["w2"]))
    b2 = pack_vec(q1["b2"], q2["b2"])

    w3 = (jnp.zeros((H_pad, OUT_PAD), jnp.float32)
          .at[:H, 0].set(q1["w3"][:, 0]).at[H:H2, 1].set(q2["w3"][:, 0]))
    b3 = (jnp.zeros((1, OUT_PAD), jnp.float32)
          .at[0, 0].set(q1["b3"][0]).at[0, 1].set(q2["b3"][0]))

    return {
        "w1x": w1x, "w1a": w1a, "b1": b1,
        "gamma": gamma, "beta": beta,
        "w2": w2, "b2": b2, "w3": w3, "b3": b3,
        "h_real": H,
    }


def critic_forward(x, a, prepared):
    """Batch-tiled, fused-two-head Critic forward. Returns (q1, q2), each [B, 1]."""
    B, Dx = x.shape
    Da = a.shape[1]
    H_pad = prepared["b1"].shape[-1]
    h_real = prepared["h_real"]

    # Batch tiling: tiles of up to TB_MAX rows; force >= 2 tiles whenever the
    # batch has >= 16 rows so v7x megacore can shard the "parallel" axis
    # across both TensorCores (no effect on v5e/v6e).
    B8 = ((B + 7) // 8) * 8
    if B8 <= TB_MAX:
        num_tiles = 2 if B8 >= 16 else 1
    else:
        num_tiles = pl.cdiv(B8, TB_MAX)
    TB = ((pl.cdiv(B8, num_tiles) + 7) // 8) * 8
    B_pad = TB * num_tiles
    if B_pad != B:
        # TODO(synk): for very large unaligned B the tail pad could instead be
        # handled with an in-kernel row mask to avoid the extra HBM traffic.
        x = jnp.pad(x, ((0, B_pad - B), (0, 0)))
        a = jnp.pad(a, ((0, B_pad - B), (0, 0)))

    weight_names = ("w1x", "w1a", "b1", "gamma", "beta", "w2", "b2", "w3", "b3")
    weights = [prepared[n] for n in weight_names]

    def resident(shape):
        n = len(shape)
        # Constant index_map -> blocks stay VMEM-resident across grid steps.
        return pl.BlockSpec(shape, lambda i, n=n: (0,) * n)

    in_specs = [
        pl.BlockSpec((TB, Dx), lambda i: (i, 0)),        # x tile
        pl.BlockSpec((TB, Da), lambda i: (i, 0)),        # a tile
    ] + [resident(w.shape) for w in weights]
    out_specs = pl.BlockSpec((TB, OUT_PAD), lambda i: (i, 0))

    # Advisory cost hint so XLA can schedule/overlap this small call.
    flops = 2 * B_pad * (Dx * H_pad + Da * H_pad + H_pad * H_pad + H_pad * OUT_PAD)
    transcendentals = 2 * B_pad * H_pad            # tanh + exp(ELU) per hidden lane
    bytes_accessed = 4 * (B_pad * (Dx + Da + OUT_PAD)
                          + sum(int(w.size) for w in weights))

    kernel = functools.partial(_critic_kernel, h_real=h_real)

    out = pl.pallas_call(
        kernel,
        out_shape=jax.ShapeDtypeStruct((B_pad, OUT_PAD), jnp.float32),
        grid=(num_tiles,),
        in_specs=in_specs,
        out_specs=out_specs,
        compiler_params=pltpu.CompilerParams(
            dimension_semantics=("parallel",)),          # megacore sharding on v7x
        cost_estimate=pl.CostEstimate(
            flops=flops,
            transcendentals=transcendentals,
            bytes_accessed=bytes_accessed),
    )(x, a, *weights)

    # Single slab readback, then split (avoids reading the slab twice).
    qpair = out[:B, :2]
    return qpair[:, 0:1], qpair[:, 1:2]


def reference_forward(x, a, params):
    """Pure-JAX reference mirroring the PyTorch Critic."""
    xa = jnp.concatenate([x, a], axis=-1)

    def q_net(p):
        h = xa @ p["w1"] + p["b1"]
        mean = jnp.mean(h, -1, keepdims=True)
        var = jnp.mean((h - mean) ** 2, -1, keepdims=True)
        h = (h - mean) / jnp.sqrt(var + LN_EPS) * p["gamma"] + p["beta"]
        h = jnp.tanh(h)
        h = h @ p["w2"] + p["b2"]
        h = jnp.where(h > 0, h, jnp.exp(h) - 1.0)
        return h @ p["w3"] + p["b3"]

    return q_net(params["q1"]), q_net(params["q2"])


if __name__ == "__main__":
    latent_dims, hidden_dims, action_dims = 12, 32, 8
    batch = 8

    key = jax.random.PRNGKey(0)
    k_p, k_x, k_a = jax.random.split(key, 3)

    params = init_params(k_p, latent_dims, hidden_dims, action_dims)
    prepared = prepare_params(params, latent_dims)

    x = jax.random.normal(k_x, (batch, latent_dims), jnp.float32)
    a = jax.random.normal(k_a, (batch, action_dims), jnp.float32)

    q1, q2 = critic_forward(x, a, prepared)
    jax.block_until_ready((q1, q2))

    r1, r2 = reference_forward(x, a, params)
    assert q1.shape == (batch, 1) and q2.shape == (batch, 1)
    assert jnp.allclose(q1, r1, atol=1e-4, rtol=1e-4)
    assert jnp.allclose(q2, r2, atol=1e-4, rtol=1e-4)

    print("KERNEL_OK")
</pallas_src>

<mosaic_0001>
module attributes {stable_mosaic.version = 11 : i64} {
  func.func @_critic_kernel(%arg0: i32, %arg1: memref<8x12xf32, #tpu.memory_space<vmem>>, %arg2: memref<8x8xf32, #tpu.memory_space<vmem>>, %arg3: memref<12x128xf32, #tpu.memory_space<vmem>>, %arg4: memref<8x128xf32, #tpu.memory_space<vmem>>, %arg5: memref<1x128xf32, #tpu.memory_space<vmem>>, %arg6: memref<1x128xf32, #tpu.memory_space<vmem>>, %arg7: memref<1x128xf32, #tpu.memory_space<vmem>>, %arg8: memref<128x128xf32, #tpu.memory_space<vmem>>, %arg9: memref<1x128xf32, #tpu.memory_space<vmem>>, %arg10: memref<128x128xf32, #tpu.memory_space<vmem>>, %arg11: memref<1x128xf32, #tpu.memory_space<vmem>>, %arg12: memref<8x128xf32, #tpu.memory_space<vmem>>) attributes {dimension_semantics = [#tpu.dimension_semantics<parallel>], iteration_bounds = array<i64: 1>, scalar_prefetch = 0 : i64, scratch_operands = 0 : i64, tpu.core_type = #tpu.core_type<tc>, window_params = [{transform_indices = @transform_0, window_bounds = array<i64: 8, 12>}, {transform_indices = @transform_1, window_bounds = array<i64: 8, 8>}, {pipeline_mode = #tpu.pipeline_mode<synchronous>, transform_indices = @transform_2, window_bounds = array<i64: 12, 128>}, {pipeline_mode = #tpu.pipeline_mode<synchronous>, transform_indices = @transform_3, window_bounds = array<i64: 8, 128>}, {pipeline_mode = #tpu.pipeline_mode<synchronous>, transform_indices = @transform_4, window_bounds = array<i64: 1, 128>}, {pipeline_mode = #tpu.pipeline_mode<synchronous>, transform_indices = @transform_5, window_bounds = array<i64: 1, 128>}, {pipeline_mode = #tpu.pipeline_mode<synchronous>, transform_indices = @transform_6, window_bounds = array<i64: 1, 128>}, {pipeline_mode = #tpu.pipeline_mode<synchronous>, transform_indices = @transform_7, window_bounds = array<i64: 128, 128>}, {pipeline_mode = #tpu.pipeline_mode<synchronous>, transform_indices = @transform_8, window_bounds = array<i64: 1, 128>}, {pipeline_mode = #tpu.pipeline_mode<synchronous>, transform_indices = @transform_9, window_bounds = array<i64: 128, 128>}, {pipeline_mode = #tpu.pipeline_mode<synchronous>, transform_indices = @transform_10, window_bounds = array<i64: 1, 128>}, {transform_indices = @transform_11, window_bounds = array<i64: 8, 128>}]} {
    %c0 = arith.constant 0 : index
    %c0_0 = arith.constant 0 : index
    %0 = vector.load %arg1[%c0, %c0_0] : memref<8x12xf32, #tpu.memory_space<vmem>>, vector<8x12xf32>
    %c0_1 = arith.constant 0 : index
    %c0_2 = arith.constant 0 : index
    %1 = vector.load %arg2[%c0_1, %c0_2] : memref<8x8xf32, #tpu.memory_space<vmem>>, vector<8x8xf32>
    %2 = tpu.iota {dimensions = array<i32: 1>} : vector<1x128xi32>
    %c32_i32 = arith.constant 32 : i32
    %3 = vector.broadcast %c32_i32 : i32 to vector<1x128xi32>
    %4 = arith.cmpi slt, %2, %3 : vector<1x128xi32>
    %5 = arith.extui %4 : vector<1x128xi1> to vector<1x128xi32>
    %6 = arith.sitofp %5 : vector<1x128xi32> to vector<1x128xf32>
    %c32_i32_3 = arith.constant 32 : i32
    %7 = vector.broadcast %c32_i32_3 : i32 to vector<1x128xi32>
    %8 = arith.cmpi sge, %2, %7 : vector<1x128xi32>
    %c64_i32 = arith.constant 64 : i32
    %9 = vector.broadcast %c64_i32 : i32 to vector<1x128xi32>
    %10 = arith.cmpi slt, %2, %9 : vector<1x128xi32>
    %11 = arith.andi %8, %10 : vector<1x128xi1>
    %12 = arith.extui %11 : vector<1x128xi1> to vector<1x128xi32>
    %13 = arith.sitofp %12 : vector<1x128xi32> to vector<1x128xf32>
    %c0_4 = arith.constant 0 : index
    %c0_5 = arith.constant 0 : index
    %14 = vector.load %arg3[%c0_4, %c0_5] : memref<12x128xf32, #tpu.memory_space<vmem>>, vector<12x128xf32>
    %cst = arith.constant dense<0.000000e+00> : vector<8x128xf32>
    %15 = tpu.matmul %0, %14, %cst {dimension_numbers = #tpu.dot_dimension_numbers<[1], [0], [0], [1], [0, 0, 1, 1], [], []>} : vector<8x12xf32>, vector<12x128xf32>, vector<8x128xf32> -> vector<8x128xf32>
    %c0_6 = arith.constant 0 : index
    %c0_7 = arith.constant 0 : index
    %16 = vector.load %arg4[%c0_6, %c0_7] : memref<8x128xf32, #tpu.memory_space<vmem>>, vector<8x128xf32>
    %cst_8 = arith.constant dense<0.000000e+00> : vector<8x128xf32>
    %17 = tpu.matmul %1, %16, %cst_8 {dimension_numbers = #tpu.dot_dimension_numbers<[1], [0], [0], [1], [0, 0, 1, 1], [], []>} : vector<8x8xf32>, vector<8x128xf32>, vector<8x128xf32> -> vector<8x128xf32>
    %18 = arith.addf %15, %17 : vector<8x128xf32>
    %c0_9 = arith.constant 0 : index
    %c0_10 = arith.constant 0 : index
    %19 = vector.load %arg5[%c0_9, %c0_10] : memref<1x128xf32, #tpu.memory_space<vmem>>, vector<1x128xf32>
    %20 = vector.broadcast %19 : vector<1x128xf32> to vector<8x128xf32>
    %21 = arith.addf %18, %20 : vector<8x128xf32>
    %22 = vector.broadcast %6 : vector<1x128xf32> to vector<8x128xf32>
    %23 = arith.mulf %21, %22 : vector<8x128xf32>
    %cst_11 = arith.constant dense<0.000000e+00> : vector<8xf32>
    %24 = vector.multi_reduction <add>, %23, %cst_11 [1] : vector<8x128xf32> to vector<8xf32>
    %25 = vector.shape_cast %24 : vector<8xf32> to vector<8x1xf32>
    %cst_12 = arith.constant 3.125000e-02 : f32
    %26 = vector.broadcast %cst_12 : f32 to vector<8x1xf32>
    %27 = arith.mulf %25, %26 : vector<8x1xf32>
    %28 = vector.broadcast %13 : vector<1x128xf32> to vector<8x128xf32>
    %29 = arith.mulf %21, %28 : vector<8x128xf32>
    %cst_13 = arith.constant dense<0.000000e+00> : vector<8xf32>
    %30 = vector.multi_reduction <add>, %29, %cst_13 [1] : vector<8x128xf32> to vector<8xf32>
    %31 = vector.shape_cast %30 : vector<8xf32> to vector<8x1xf32>
    %cst_14 = arith.constant 3.125000e-02 : f32
    %32 = vector.broadcast %cst_14 : f32 to vector<8x1xf32>
    %33 = arith.mulf %31, %32 : vector<8x1xf32>
    %34 = vector.broadcast %27 : vector<8x1xf32> to vector<8x128xf32>
    %35 = arith.subf %21, %34 : vector<8x128xf32>
    %36 = vector.broadcast %6 : vector<1x128xf32> to vector<8x128xf32>
    %37 = arith.mulf %35, %36 : vector<8x128xf32>
    %38 = vector.broadcast %33 : vector<8x1xf32> to vector<8x128xf32>
    %39 = arith.subf %21, %38 : vector<8x128xf32>
    %40 = vector.broadcast %13 : vector<1x128xf32> to vector<8x128xf32>
    %41 = arith.mulf %39, %40 : vector<8x128xf32>
    %42 = arith.addf %37, %41 : vector<8x128xf32>
    %43 = arith.mulf %42, %42 : vector<8x128xf32>
    %44 = vector.broadcast %6 : vector<1x128xf32> to vector<8x128xf32>
    %45 = arith.mulf %43, %44 : vector<8x128xf32>
    %cst_15 = arith.constant dense<0.000000e+00> : vector<8xf32>
    %46 = vector.multi_reduction <add>, %45, %cst_15 [1] : vector<8x128xf32> to vector<8xf32>
    %47 = vector.shape_cast %46 : vector<8xf32> to vector<8x1xf32>
    %cst_16 = arith.constant 3.125000e-02 : f32
    %48 = vector.broadcast %cst_16 : f32 to vector<8x1xf32>
    %49 = arith.mulf %47, %48 : vector<8x1xf32>
    %50 = vector.broadcast %13 : vector<1x128xf32> to vector<8x128xf32>
    %51 = arith.mulf %43, %50 : vector<8x128xf32>
    %cst_17 = arith.constant dense<0.000000e+00> : vector<8xf32>
    %52 = vector.multi_reduction <add>, %51, %cst_17 [1] : vector<8x128xf32> to vector<8xf32>
    %53 = vector.shape_cast %52 : vector<8xf32> to vector<8x1xf32>
    %cst_18 = arith.constant 3.125000e-02 : f32
    %54 = vector.broadcast %cst_18 : f32 to vector<8x1xf32>
    %55 = arith.mulf %53, %54 : vector<8x1xf32>
    %cst_19 = arith.constant 9.99999974E-6 : f32
    %56 = vector.broadcast %cst_19 : f32 to vector<8x1xf32>
    %57 = arith.addf %49, %56 : vector<8x1xf32>
    %58 = math.rsqrt %57 : vector<8x1xf32>
    %59 = vector.broadcast %58 : vector<8x1xf32> to vector<8x128xf32>
    %60 = vector.broadcast %6 : vector<1x128xf32> to vector<8x128xf32>
    %61 = arith.mulf %59, %60 : vector<8x128xf32>
    %cst_20 = arith.constant 9.99999974E-6 : f32
    %62 = vector.broadcast %cst_20 : f32 to vector<8x1xf32>
    %63 = arith.addf %55, %62 : vector<8x1xf32>
    %64 = math.rsqrt %63 : vector<8x1xf32>
    %65 = vector.broadcast %64 : vector<8x1xf32> to vector<8x128xf32>
    %66 = vector.broadcast %13 : vector<1x128xf32> to vector<8x128xf32>
    %67 = arith.mulf %65, %66 : vector<8x128xf32>
    %68 = arith.addf %61, %67 : vector<8x128xf32>
    %69 = arith.mulf %42, %68 : vector<8x128xf32>
    %c0_21 = arith.constant 0 : index
    %c0_22 = arith.constant 0 : index
    %70 = vector.load %arg6[%c0_21, %c0_22] : memref<1x128xf32, #tpu.memory_space<vmem>>, vector<1x128xf32>
    %71 = vector.broadcast %70 : vector<1x128xf32> to vector<8x128xf32>
    %72 = arith.mulf %69, %71 : vector<8x128xf32>
    %c0_23 = arith.constant 0 : index
    %c0_24 = arith.constant 0 : index
    %73 = vector.load %arg7[%c0_23, %c0_24] : memref<1x128xf32, #tpu.memory_space<vmem>>, vector<1x128xf32>
    %74 = vector.broadcast %73 : vector<1x128xf32> to vector<8x128xf32>
    %75 = arith.addf %72, %74 : vector<8x128xf32>
    %76 = math.tanh %75 : vector<8x128xf32>
    %c0_25 = arith.constant 0 : index
    %c0_26 = arith.constant 0 : index
    %77 = vector.load %arg8[%c0_25, %c0_26] : memref<128x128xf32, #tpu.memory_space<vmem>>, vector<128x128xf32>
    %cst_27 = arith.constant dense<0.000000e+00> : vector<8x128xf32>
    %78 = tpu.matmul %76, %77, %cst_27 {dimension_numbers = #tpu.dot_dimension_numbers<[1], [0], [0], [1], [0, 0, 1, 1], [], []>} : vector<8x128xf32>, vector<128x128xf32>, vector<8x128xf32> -> vector<8x128xf32>
    %c0_28 = arith.constant 0 : index
    %c0_29 = arith.constant 0 : index
    %79 = vector.load %arg9[%c0_28, %c0_29] : memref<1x128xf32, #tpu.memory_space<vmem>>, vector<1x128xf32>
    %80 = vector.broadcast %79 : vector<1x128xf32> to vector<8x128xf32>
    %81 = arith.addf %78, %80 : vector<8x128xf32>
    %cst_30 = arith.constant 0.000000e+00 : f32
    %82 = vector.broadcast %cst_30 : f32 to vector<8x128xf32>
    %83 = arith.cmpf ogt, %81, %82 : vector<8x128xf32>
    %84 = math.exp %81 : vector<8x128xf32>
    %cst_31 = arith.constant 1.000000e+00 : f32
    %85 = vector.broadcast %cst_31 : f32 to vector<8x128xf32>
    %86 = arith.subf %84, %85 : vector<8x128xf32>
    %87 = arith.select %83, %81, %86 : vector<8x128xi1>, vector<8x128xf32>
    %c0_32 = arith.constant 0 : index
    %c0_33 = arith.constant 0 : index
    %88 = vector.load %arg10[%c0_32, %c0_33] : memref<128x128xf32, #tpu.memory_space<vmem>>, vector<128x128xf32>
    %cst_34 = arith.constant dense<0.000000e+00> : vector<8x128xf32>
    %89 = tpu.matmul %87, %88, %cst_34 {dimension_numbers = #tpu.dot_dimension_numbers<[1], [0], [0], [1], [0, 0, 1, 1], [], []>} : vector<8x128xf32>, vector<128x128xf32>, vector<8x128xf32> -> vector<8x128xf32>
    %c0_35 = arith.constant 0 : index
    %c0_36 = arith.constant 0 : index
    %90 = vector.load %arg11[%c0_35, %c0_36] : memref<1x128xf32, #tpu.memory_space<vmem>>, vector<1x128xf32>
    %91 = vector.broadcast %90 : vector<1x128xf32> to vector<8x128xf32>
    %92 = arith.addf %89, %91 : vector<8x128xf32>
    %c0_37 = arith.constant 0 : index
    %c0_38 = arith.constant 0 : index
    %93 = vector.load %arg12[%c0_37, %c0_38] : memref<8x128xf32, #tpu.memory_space<vmem>>, vector<8x128xf32>
    tpu.vector_store %arg12[%c0_37, %c0_38], %92 {strides = array<i32>} : memref<8x128xf32, #tpu.memory_space<vmem>>, vector<8x128xf32>,
    return
  }
  func.func @transform_0(%arg0: i32) -> (i32, i32) {
    %c0_i32 = arith.constant 0 : i32
    %c0_i32_0 = arith.constant 0 : i32
    return %arg0, %c0_i32 : i32, i32
  }
  func.func @transform_1(%arg0: i32) -> (i32, i32) {
    %c0_i32 = arith.constant 0 : i32
    %c0_i32_0 = arith.constant 0 : i32
    return %arg0, %c0_i32 : i32, i32
  }
  func.func @transform_2(%arg0: i32) -> (i32, i32) {
    %c0_i32 = arith.constant 0 : i32
    %c0_i32_0 = arith.constant 0 : i32
    %c0_i32_1 = arith.constant 0 : i32
    return %c0_i32, %c0_i32_0 : i32, i32
  }
  func.func @transform_3(%arg0: i32) -> (i32, i32) {
    %c0_i32 = arith.constant 0 : i32
    %c0_i32_0 = arith.constant 0 : i32
    %c0_i32_1 = arith.constant 0 : i32
    return %c0_i32, %c0_i32_0 : i32, i32
  }
  func.func @transform_4(%arg0: i32) -> (i32, i32) {
    %c0_i32 = arith.constant 0 : i32
    %c0_i32_0 = arith.constant 0 : i32
    %c0_i32_1 = arith.constant 0 : i32
    return %c0_i32, %c0_i32_0 : i32, i32
  }
  func.func @transform_5(%arg0: i32) -> (i32, i32) {
    %c0_i32 = arith.constant 0 : i32
    %c0_i32_0 = arith.constant 0 : i32
    %c0_i32_1 = arith.constant 0 : i32
    return %c0_i32, %c0_i32_0 : i32, i32
  }
  func.func @transform_6(%arg0: i32) -> (i32, i32) {
    %c0_i32 = arith.constant 0 : i32
    %c0_i32_0 = arith.constant 0 : i32
    %c0_i32_1 = arith.constant 0 : i32
    return %c0_i32, %c0_i32_0 : i32, i32
  }
  func.func @transform_7(%arg0: i32) -> (i32, i32) {
    %c0_i32 = arith.constant 0 : i32
    %c0_i32_0 = arith.constant 0 : i32
    %c0_i32_1 = arith.constant 0 : i32
    return %c0_i32, %c0_i32_0 : i32, i32
  }
  func.func @transform_8(%arg0: i32) -> (i32, i32) {
    %c0_i32 = arith.constant 0 : i32
    %c0_i32_0 = arith.constant 0 : i32
    %c0_i32_1 = arith.constant 0 : i32
    return %c0_i32, %c0_i32_0 : i32, i32
  }
  func.func @transform_9(%arg0: i32) -> (i32, i32) {
    %c0_i32 = arith.constant 0 : i32
    %c0_i32_0 = arith.constant 0 : i32
    %c0_i32_1 = arith.constant 0 : i32
    return %c0_i32, %c0_i32_0 : i32, i32
  }
  func.func @transform_10(%arg0: i32) -> (i32, i32) {
    %c0_i32 = arith.constant 0 : i32
    %c0_i32_0 = arith.constant 0 : i32
    %c0_i32_1 = arith.constant 0 : i32
    return %c0_i32, %c0_i32_0 : i32, i32
  }
  func.func @transform_11(%arg0: i32) -> (i32, i32) {
    %c0_i32 = arith.constant 0 : i32
    %c0_i32_0 = arith.constant 0 : i32
    return %arg0, %c0_i32 : i32, i32
  }
}

</mosaic_0001>

<llo_original>
// kernel: tpu_custom_call.1
$region0: #{tpu_custom_call.1}
  #allocation0 [shape = 'u32[]', space=smem, size = 0x4, offset = 0x4, fixed_abs, tag = 'smem constant byte address 0x4 - core index']
  #allocation1 [shape = 'u32[72,128]{1,0:T(1,128)}', space=vmem, size = 0x9000, scoped, tag = 'internal scratch']
  %s0 = inlined_call_operand.hbm [shape: f32[8,12], index: 0, kind: input, shape index: {}]
  %s1 = inlined_call_operand.hbm [shape: f32[8,8], index: 1, kind: input, shape index: {}]
  %s2 = inlined_call_operand.hbm [shape: f32[12,128], index: 2, kind: input, shape index: {}]
  %s3 = inlined_call_operand.hbm [shape: f32[8,128], index: 3, kind: input, shape index: {}]
  %s4 = inlined_call_operand.vmem [shape: f32[1,128], index: 4, kind: input, shape index: {}]
  %s5 = inlined_call_operand.vmem [shape: f32[1,128], index: 5, kind: input, shape index: {}]
  %s6 = inlined_call_operand.vmem [shape: f32[1,128], index: 6, kind: input, shape index: {}]
  %s7 = inlined_call_operand.hbm [shape: f32[128,128], index: 7, kind: input, shape index: {}]
  %s8 = inlined_call_operand.vmem [shape: f32[1,128], index: 8, kind: input, shape index: {}]
  %s9 = inlined_call_operand.hbm [shape: f32[128,128], index: 9, kind: input, shape index: {}]
  %s10 = inlined_call_operand.vmem [shape: f32[1,128], index: 10, kind: input, shape index: {}]
  %s11 = inlined_call_operand.hbm [shape: f32[8,128], index: 11, kind: output, shape index: {}]
  %s12 = sld [smem:[#allocation0]]
  $region78: #{tpu_custom_call.1} parent=0
    _
  %s14 = ssub.s32 1, %s12
  %s15 = scalar_select 0, %s14, %s12
  $region1: #{tpu_custom_call.1} parent=0
    #allocation2 [shape = 'u8[4096]{0}', space=vmem, size = 0x1000, scoped, tag = 'input window, operand 0, single buffered']
    #allocation3 [shape = 's32[1]{0}', space=sflag, size = 0x4, scoped, tag = 'scoped memory for tpu_custom_call.1']
    #allocation4 [shape = 's32[1]{0}', space=sflag, size = 0x4, scoped, tag = 'scoped memory for tpu_custom_call.1']
    #allocation5 [shape = 'u8[4096]{0}', space=vmem, size = 0x1000, scoped, tag = 'input window, operand 1, single buffered']
    #allocation6 [shape = 's32[1]{0}', space=sflag, size = 0x4, scoped, tag = 'scoped memory for tpu_custom_call.1']
    #allocation7 [shape = 'u8[8192]{0}', space=vmem, size = 0x2000, scoped, tag = 'input window, operand 2, single buffered']
    #allocation8 [shape = 'u8[4096]{0}', space=vmem, size = 0x1000, scoped, tag = 'input window, operand 3, single buffered']
    #allocation9 [shape = 's32[1]{0}', space=sflag, size = 0x4, scoped, tag = 'scoped memory for tpu_custom_call.1']
    #allocation10 [shape = 'u8[65536]{0}', space=vmem, size = 0x10000, scoped, tag = 'input window, operand 7, single buffered']
    #allocation11 [shape = 'u8[65536]{0}', space=vmem, size = 0x10000, scoped, tag = 'input window, operand 9, single buffered']
    #allocation12 [shape = 's32[1]{0}', space=sflag, size = 0x4, scoped, tag = 'scoped memory for tpu_custom_call.1']
    #allocation13 [shape = 'u8[4096]{0}', space=vmem, size = 0x1000, scoped, tag = 'output window, operand 0, single buffered']
    %16 = vsyncpa [#allocation3], 0
    %17 = vsyncpa [#allocation6], 0
    %18 = vsyncpa [#allocation9], 0
    %19 = vsyncpa [#allocation12], 0
    %20 = vsyncpa [#allocation4], 0
    // Predicated region
    $region2: #{tpu_custom_call.1} parent=1 // pred_check
      _
    $region3: #{tpu_custom_call.1} parent=1 // pred_check_branch
      %22 = sbr.rel (0) target = $region5
    $region4: #{tpu_custom_call.1} parent=1 // pred_region
      %24 = vsyncadd [#allocation3], 0
      %s26 = sshll.u32 %s0, 4
      %s27 = int_to_ptr.hbm [resolvable:$true] %s26
      %s28 = sshll.u32 [#allocation2], 4
      %s29 = int_to_ptr.vmem [resolvable:$true] %s28
      %31 = dma.hbm_to_vmem [thread:$0]  %s27, 128, %s29, [#allocation3]
    $region5: #{tpu_custom_call.1} parent=1 // pred_fallthru
      _
    // Predicated region
    $region6: #{tpu_custom_call.1} parent=1 // pred_check
      _
    $region7: #{tpu_custom_call.1} parent=1 // pred_check_branch
      %33 = sbr.rel (0) target = $region9
    $region8: #{tpu_custom_call.1} parent=1 // pred_region
      %35 = vsyncadd [#allocation6], 0
      %s37 = sshll.u32 %s1, 4
      %s38 = int_to_ptr.hbm [resolvable:$true] %s37
      %s39 = sshll.u32 [#allocation5], 4
      %s40 = int_to_ptr.vmem [resolvable:$true] %s39
      %42 = dma.hbm_to_vmem [thread:$0]  %s38, 128, %s40, [#allocation6]
    $region9: #{tpu_custom_call.1} parent=1 // pred_fallthru
      _
    // Predicated region
    $region10: #{tpu_custom_call.1} parent=1 // pred_check
      _
    $region11: #{tpu_custom_call.1} parent=1 // pred_check_branch
      %44 = sbr.rel (0) target = $region13
    $region12: #{tpu_custom_call.1} parent=1 // pred_region
      %46 = vsyncadd [#allocation6], 0
      %s47 = sshll.u32 %s2, 4
      %s48 = int_to_ptr.hbm [resolvable:$true] %s47
      %s49 = sshll.u32 [#allocation7], 4
      %s50 = int_to_ptr.vmem [resolvable:$true] %s49
      %55 = dma.hbm_to_vmem [thread:$0]  %s48, 256, %s50, [#allocation6], 128, 128, 8
    $region13: #{tpu_custom_call.1} parent=1 // pred_fallthru
      _
    // Predicated region
    $region14: #{tpu_custom_call.1} parent=1 // pred_check
      _
    $region15: #{tpu_custom_call.1} parent=1 // pred_check_branch
      %57 = sbr.rel (0) target = $region17
    $region16: #{tpu_custom_call.1} parent=1 // pred_region
      %59 = vsyncadd [#allocation9], 0
      %s61 = sshll.u32 %s3, 4
      %s62 = int_to_ptr.hbm [resolvable:$true] %s61
      %s63 = sshll.u32 [#allocation8], 4
      %s64 = int_to_ptr.vmem [resolvable:$true] %s63
      %66 = dma.hbm_to_vmem [thread:$0]  %s62, 128, %s64, [#allocation9]
    $region17: #{tpu_custom_call.1} parent=1 // pred_fallthru
      _
    // Predicated region
    $region18: #{tpu_custom_call.1} parent=1 // pred_check
      _
    $region19: #{tpu_custom_call.1} parent=1 // pred_check_branch
      %68 = sbr.rel (0) target = $region21
    $region20: #{tpu_custom_call.1} parent=1 // pred_region
      _
    $region21: #{tpu_custom_call.1} parent=1 // pred_fallthru
      _
    // Predicated region
    $region22: #{tpu_custom_call.1} parent=1 // pred_check
      _
    $region23: #{tpu_custom_call.1} parent=1 // pred_check_branch
      %70 = sbr.rel (0) target = $region25
    $region24: #{tpu_custom_call.1} parent=1 // pred_region
      _
    $region25: #{tpu_custom_call.1} parent=1 // pred_fallthru
      _
    // Predicated region
    $region26: #{tpu_custom_call.1} parent=1 // pred_check
      _
    $region27: #{tpu_custom_call.1} parent=1 // pred_check_branch
      %72 = sbr.rel (0) target = $region29
    $region28: #{tpu_custom_call.1} parent=1 // pred_region
      _
    $region29: #{tpu_custom_call.1} parent=1 // pred_fallthru
      _
    // Predicated region
    $region30: #{tpu_custom_call.1} parent=1 // pred_check
      _
    $region31: #{tpu_custom_call.1} parent=1 // pred_check_branch
      %74 = sbr.rel (0) target = $region33
    $region32: #{tpu_custom_call.1} parent=1 // pred_region
      %76 = vsyncadd [#allocation9], 0
      %s77 = sshll.u32 %s7, 4
      %s78 = int_to_ptr.hbm [resolvable:$true] %s77
      %s79 = sshll.u32 [#allocation10], 4
      %s80 = int_to_ptr.vmem [resolvable:$true] %s79
      %85 = dma.hbm_to_vmem [thread:$0]  %s78, 2048, %s80, [#allocation9], 128, 128, 8
    $region33: #{tpu_custom_call.1} parent=1 // pred_fallthru
      _
    // Predicated region
    $region34: #{tpu_custom_call.1} parent=1 // pred_check
      _
    $region35: #{tpu_custom_call.1} parent=1 // pred_check_branch
      %87 = sbr.rel (0) target = $region37
    $region36: #{tpu_custom_call.1} parent=1 // pred_region
      _
    $region37: #{tpu_custom_call.1} parent=1 // pred_fallthru
      _
    // Predicated region
    $region38: #{tpu_custom_call.1} parent=1 // pred_check
      _
    $region39: #{tpu_custom_call.1} parent=1 // pred_check_branch
      %89 = sbr.rel (0) target = $region41
    $region40: #{tpu_custom_call.1} parent=1 // pred_region
      %91 = vsyncadd [#allocation12], 0
      %s92 = sshll.u32 %s9, 4
      %s93 = int_to_ptr.hbm [resolvable:$true] %s92
      %s94 = sshll.u32 [#allocation11], 4
      %s95 = int_to_ptr.vmem [resolvable:$true] %s94
      %100 = dma.hbm_to_vmem [thread:$0]  %s93, 2048, %s95, [#allocation12], 128, 128, 8
    $region41: #{tpu_custom_call.1} parent=1 // pred_fallthru
      _
    // Predicated region
    $region42: #{tpu_custom_call.1} parent=1 // pred_check
      _
    $region43: #{tpu_custom_call.1} parent=1 // pred_check_branch
      %102 = sbr.rel (0) target = $region45
    $region44: #{tpu_custom_call.1} parent=1 // pred_region
      _
    $region45: #{tpu_custom_call.1} parent=1 // pred_fallthru
      _
    // Predicated region
    $region46: #{tpu_custom_call.1} parent=1 // pred_check
      _
    $region47: #{tpu_custom_call.1} parent=1 // pred_check_branch
      %104 = sbr.rel (0) target = $region49
    $region48: #{tpu_custom_call.1} parent=1 // pred_region
      %106 = dma.done [#allocation3], 128
    $region49: #{tpu_custom_call.1} parent=1 // pred_fallthru
      _
    // Predicated region
    $region50: #{tpu_custom_call.1} parent=1 // pred_check
      _
    $region51: #{tpu_custom_call.1} parent=1 // pred_check_branch
      %108 = sbr.rel (0) target = $region53
    $region52: #{tpu_custom_call.1} parent=1 // pred_region
      %110 = dma.done [#allocation6], 128
    $region53: #{tpu_custom_call.1} parent=1 // pred_fallthru
      _
    // Predicated region
    $region54: #{tpu_custom_call.1} parent=1 // pred_check
      _
    $region55: #{tpu_custom_call.1} parent=1 // pred_check_branch
      %112 = sbr.rel (0) target = $region57
    $region56: #{tpu_custom_call.1} parent=1 // pred_region
      %114 = dma.done [#allocation6], 256
    $region57: #{tpu_custom_call.1} parent=1 // pred_fallthru
      _
    // Predicated region
    $region58: #{tpu_custom_call.1} parent=1 // pred_check
      _
    $region59: #{tpu_custom_call.1} parent=1 // pred_check_branch
      %116 = sbr.rel (0) target = $region61
    $region60: #{tpu_custom_call.1} parent=1 // pred_region
      %118 = dma.done [#allocation9], 128
    $region61: #{tpu_custom_call.1} parent=1 // pred_fallthru
      _
    // Predicated region
    $region62: #{tpu_custom_call.1} parent=1 // pred_check
      _
    $region63: #{tpu_custom_call.1} parent=1 // pred_check_branch
      %120 = sbr.rel (0) target = $region65
    $region64: #{tpu_custom_call.1} parent=1 // pred_region
      %122 = dma.done [#allocation9], 2048
    $region65: #{tpu_custom_call.1} parent=1 // pred_fallthru
      _
    // Predicated region
    $region66: #{tpu_custom_call.1} parent=1 // pred_check
      _
    $region67: #{tpu_custom_call.1} parent=1 // pred_check_branch
      %124 = sbr.rel (0) target = $region69
    $region68: #{tpu_custom_call.1} parent=1 // pred_region
      %126 = dma.done [#allocation12], 2048
    $region69: #{tpu_custom_call.1} parent=1 // pred_fallthru
      _
    %v127 = vld [vmem:[#allocation2] sm:$0xff]
    %v128 = vld [vmem:[#allocation5] sm:$0xff]
    %v129 = vlaneseq
    %v130 = vand.u32 %v129, 127
    %vm131 = vcmp.lt.s32.totalorder %v130, 32
    %v132 = vsel %vm131, 1, 0
    %v133 = vcvt.s32.f32 %v132
    %vm134 = vcmp.ge.s32.totalorder %v130, 32
    %vm135 = vcmp.lt.s32.totalorder %v130, 64
    %vm136 = vmand %vm134, %vm135
    %v137 = vsel %vm136, 1, 0
    %v138 = vcvt.s32.f32 %v137
    %v139 = vld [vmem:[#allocation7] sm:$0xff]
    %v140 = vld [vmem:[#allocation7 + $0x8] sm:$0xf]
    %v141 = vld [vmem:[#allocation8] sm:$0xff]
    %vm142 = vcmask 64512
    %v144 = vsel %vm142, %v128, 0
    %146 = vmatpush.msra.mxu0 0.0
    %147 = vmatpush.msra.mxu0 0.0
    %148 = vmatpush.msra.mxu0 0.0
    %149 = vmatpush.msra.mxu0 0.0
    %150 = vmatpush.msra.mxu0 0.0
    %151 = vmatpush.msra.mxu0 0.0
    %152 = vmatpush.msra.mxu0 0.0
    %153 = vmatpush.msra.mxu0 0.0
    %154 = vmatpush.msra.mxu0 0.0
    %155 = vmatpush.msra.mxu0 0.0
    %156 = vmatpush.msra.mxu0 0.0
    %157 = vmatpush.msra.mxu0 0.0
    %158 = vmatpush.msra.mxu0 0.0
    %159 = vmatpush.msra.mxu0 0.0
    %160 = vmatpush.msra.mxu0 0.0
    %161 = vmatpush.msra.mxu0 %v141
    %162 = vmatmul.f32.gmra.mxu0 %v144
    %v163 = vpop.f32.mrf.mxu0
    %v164 = vadd.f32 0.0, %v163
    %165 = vdwg.mxu0
    %vm166 = vcmask 97280
    %v168 = vsel %vm166, %v127, 0
    %vm170 = vcmask 1043456
    %v172 = vsel %vm170, %v140, 0
    %174 = vmatpush.msra.mxu0 0.0
    %175 = vmatpush.msra.mxu0 0.0
    %176 = vmatpush.msra.mxu0 0.0
    %177 = vmatpush.msra.mxu0 0.0
    %178 = vmatpush.msra.mxu0 0.0
    %179 = vmatpush.msra.mxu0 0.0
    %180 = vmatpush.msra.mxu0 0.0
    %181 = vmatpush.msra.mxu0 0.0
    %182 = vmatpush.msra.mxu0 0.0
    %183 = vmatpush.msra.mxu0 0.0
    %184 = vmatpush.msra.mxu0 0.0
    %185 = vmatpush.msra.mxu0 0.0
    %186 = vmatpush.msra.mxu0 0.0
    %187 = vmatpush.msra.mxu0 0.0
    %188 = vmatpush.msra.mxu0 %v172
    %189 = vmatpush.msra.mxu0 %v139
    %190 = vmatmul.f32.gmra.mxu0 %v168
    %v191 = vpop.f32.mrf.mxu0
    %v192 = vadd.f32 %v164, %v191
    %193 = vdwg.mxu0
    %v194 = vld [vmem:[%s4] sm:$0x1]
    %v196 = vperm.slane %v194, 0
    %v198 = vadd.f32 %v192, %v196
    %v199 = vmul.f32 %v198, %v133
    %200 = vadd.xlane.f32.xlu0 %v199
    %v201 = vpop.xlane.xlu0 %200
    %v202 = vmul.f32 %v201, 0.03125
    %v203 = vmul.f32 %v198, %v138
    %204 = vadd.xlane.f32.xlu0 %v203
    %v205 = vpop.xlane.xlu0 %204
    %v206 = vmul.f32 %v205, 0.03125
    %v207 = vsub.f32 %v198, %v202
    %v208 = vmul.f32 %v207, %v133
    %v209 = vsub.f32 %v198, %v206
    %v210 = vmul.f32 %v209, %v138
    %v211 = vadd.f32 %v208, %v210
    %v212 = vmul.f32 %v211, %v211
    %v213 = vmul.f32 %v212, %v133
    %214 = vadd.xlane.f32.xlu0 %v213
    %v215 = vpop.xlane.xlu0 %214
    %v216 = vmul.f32 %v215, 0.03125
    %v217 = vmul.f32 %v212, %v138
    %218 = vadd.xlane.f32.xlu0 %v217
    %v219 = vpop.xlane.xlu0 %218
    %v220 = vmul.f32 %v219, 0.03125
    %v221 = vadd.f32 %v216, 1e-05
    %v222 = vrsqrt.pop %v221
    %v223 = vmul.f32 %v222, %v221
    %v224 = vmul.f32 %v223, %v222
    %v225 = vmul.f32 0.5, %v224
    %v226 = vsub.f32 1.5, %v225
    %v227 = vmul.f32 %v222, %v226
    %vm228 = vweird.f32 %v221
    %vm229 = vweird.f32 %v222
    %vm230 = vmor %vm228, %vm229
    %v231 = vsel %vm230, %v222, %v227
    %v232 = vmul.f32 %v231, %v133
    %v233 = vadd.f32 %v220, 1e-05
    %v234 = vrsqrt.pop %v233
    %v235 = vmul.f32 %v234, %v233
    %v236 = vmul.f32 %v235, %v234
    %v237 = vmul.f32 0.5, %v236
    %v238 = vsub.f32 1.5, %v237
    %v239 = vmul.f32 %v234, %v238
    %vm240 = vweird.f32 %v233
    %vm241 = vweird.f32 %v234
    %vm242 = vmor %vm240, %vm241
    %v243 = vsel %vm242, %v234, %v239
    %v244 = vmul.f32 %v243, %v138
    %v245 = vadd.f32 %v232, %v244
    %v246 = vmul.f32 %v211, %v245
    %v247 = vld [vmem:[%s5] sm:$0x1]
    %v249 = vperm.slane %v247, 0
    %v251 = vmul.f32 %v246, %v249
    %v252 = vld [vmem:[%s6] sm:$0x1]
    %v254 = vperm.slane %v252, 0
    %v256 = vadd.f32 %v251, %v254
    %v257 = vtanh.pop %v256
    %v258 = vld [vmem:[#allocation10] sm:$0xff]
    %v259 = vld [vmem:[#allocation10 + $0x8] sm:$0xff]
    %v260 = vld [vmem:[#allocation10 + $0x10] sm:$0xff]
    %v261 = vld [vmem:[#allocation10 + $0x18] sm:$0xff]
    %v262 = vld [vmem:[#allocation10 + $0x20] sm:$0xff]
    %v263 = vld [vmem:[#allocation10 + $0x28] sm:$0xff]
    %v264 = vld [vmem:[#allocation10 + $0x30] sm:$0xff]
    %v265 = vld [vmem:[#allocation10 + $0x38] sm:$0xff]
    %v266 = vld [vmem:[#allocation10 + $0x40] sm:$0xff]
    %v267 = vld [vmem:[#allocation10 + $0x48] sm:$0xff]
    %v268 = vld [vmem:[#allocation10 + $0x50] sm:$0xff]
    %v269 = vld [vmem:[#allocation10 + $0x58] sm:$0xff]
    %v270 = vld [vmem:[#allocation10 + $0x60] sm:$0xff]
    %v271 = vld [vmem:[#allocation10 + $0x68] sm:$0xff]
    %v272 = vld [vmem:[#allocation10 + $0x70] sm:$0xff]
    %v273 = vld [vmem:[#allocation10 + $0x78] sm:$0xff]
    %v274 = vld [vmem:[%s8] sm:$0x1]
    %v276 = vperm.slane %v274, 0
    %278 = vmatpush.msra.mxu0 %v273
    %279 = vmatpush.msra.mxu0 %v272
    %280 = vmatpush.msra.mxu0 %v271
    %281 = vmatpush.msra.mxu0 %v270
    %282 = vmatpush.msra.mxu0 %v269
    %283 = vmatpush.msra.mxu0 %v268
    %284 = vmatpush.msra.mxu0 %v267
    %285 = vmatpush.msra.mxu0 %v266
    %286 = vmatpush.msra.mxu0 %v265
    %287 = vmatpush.msra.mxu0 %v264
    %288 = vmatpush.msra.mxu0 %v263
    %289 = vmatpush.msra.mxu0 %v262
    %290 = vmatpush.msra.mxu0 %v261
    %291 = vmatpush.msra.mxu0 %v260
    %292 = vmatpush.msra.mxu0 %v259
    %293 = vmatpush.msra.mxu0 %v258
    %294 = vmatmul.f32.gmra.mxu0 %v257
    %v295 = vpop.f32.mrf.mxu0
    %v296 = vadd.f32 %v276, %v295
    %297 = vdwg.mxu0
    %vm298 = vcmp.gt.f32.partialorder %v296, 0.0
    %v299 = vmul.f32 %v296, 1.442695
    %v300 = vpow.pop %v299
    %v301 = vsub.f32 %v300, 1.0
    %v302 = vsel %vm298, %v296, %v301
    %v303 = vld [vmem:[#allocation11] sm:$0xff]
    %v304 = vld [vmem:[#allocation11 + $0x8] sm:$0xff]
    %v305 = vld [vmem:[#allocation11 + $0x10] sm:$0xff]
    %v306 = vld [vmem:[#allocation11 + $0x18] sm:$0xff]
    %v307 = vld [vmem:[#allocation11 + $0x20] sm:$0xff]
    %v308 = vld [vmem:[#allocation11 + $0x28] sm:$0xff]
    %v309 = vld [vmem:[#allocation11 + $0x30] sm:$0xff]
    %v310 = vld [vmem:[#allocation11 + $0x38] sm:$0xff]
    %v311 = vld [vmem:[#allocation11 + $0x40] sm:$0xff]
    %v312 = vld [vmem:[#allocation11 + $0x48] sm:$0xff]
    %v313 = vld [vmem:[#allocation11 + $0x50] sm:$0xff]
    %v314 = vld [vmem:[#allocation11 + $0x58] sm:$0xff]
    %v315 = vld [vmem:[#allocation11 + $0x60] sm:$0xff]
    %v316 = vld [vmem:[#allocation11 + $0x68] sm:$0xff]
    %v317 = vld [vmem:[#allocation11 + $0x70] sm:$0xff]
    %v318 = vld [vmem:[#allocation11 + $0x78] sm:$0xff]
    %v319 = vld [vmem:[%s10] sm:$0x1]
    %v321 = vperm.slane %v319, 0
    %323 = vmatpush.msra.mxu0 %v318
    %324 = vmatpush.msra.mxu0 %v317
    %325 = vmatpush.msra.mxu0 %v316
    %326 = vmatpush.msra.mxu0 %v315
    %327 = vmatpush.msra.mxu0 %v314
    %328 = vmatpush.msra.mxu0 %v313
    %329 = vmatpush.msra.mxu0 %v312
    %330 = vmatpush.msra.mxu0 %v311
    %331 = vmatpush.msra.mxu0 %v310
    %332 = vmatpush.msra.mxu0 %v309
    %333 = vmatpush.msra.mxu0 %v308
    %334 = vmatpush.msra.mxu0 %v307
    %335 = vmatpush.msra.mxu0 %v306
    %336 = vmatpush.msra.mxu0 %v305
    %337 = vmatpush.msra.mxu0 %v304
    %338 = vmatpush.msra.mxu0 %v303
    %339 = vmatmul.f32.gmra.mxu0 %v302
    %v340 = vpop.f32.mrf.mxu0
    %v341 = vadd.f32 %v321, %v340
    %342 = vdwg.mxu0
    %343 = vst [vmem:[#allocation13] sm:$0xff] %v341
    // Predicated region
    $region70: #{tpu_custom_call.1} parent=1 // pred_check
      _
    $region71: #{tpu_custom_call.1} parent=1 // pred_check_branch
      %345 = sbr.rel (0) target = $region73
    $region72: #{tpu_custom_call.1} parent=1 // pred_region
      %347 = vsyncadd [#allocation4], 0
      %s349 = sshll.u32 [#allocation13], 4
      %s350 = int_to_ptr.vmem [resolvable:$true] %s349
      %s351 = sshll.u32 %s11, 4
      %s352 = int_to_ptr.hbm [resolvable:$true] %s351
      %354 = dma.vmem_to_hbm [thread:$0]  %s350, 128, %s352, [#allocation4]
    $region73: #{tpu_custom_call.1} parent=1 // pred_fallthru
      _
    // Predicated region
    $region74: #{tpu_custom_call.1} parent=1 // pred_check
      _
    $region75: #{tpu_custom_call.1} parent=1 // pred_check_branch
      %356 = sbr.rel (0) target = $region77
    $region76: #{tpu_custom_call.1} parent=1 // pred_region
      %358 = dma.done [#allocation4], 128
    $region77: #{tpu_custom_call.1} parent=1 // pred_fallthru
      _
    %359 = vsyncpa [#allocation3], 1
    %360 = vsyncpa [#allocation6], 1
    %361 = vsyncpa [#allocation9], 1
    %362 = vsyncpa [#allocation12], 1
    %363 = vsyncpa [#allocation4], 1

</llo_original>
